<compile_context>
chip_gen: v7x
topology: tpu7x:2x2x1
jax: 0.10.0
libtpu: 0.0.40
codegen_flags: <defaults>
</compile_context>

<pallas_src>
import math

import jax
import jax.numpy as jnp
import numpy as np
from jax.experimental import pallas as pl
from jax.experimental.pallas import tpu as pltpu

N_SPECIES = 4
N_STRATEGIES = 3
DIM = 2 ** N_SPECIES            # 16
H1, H2, H3 = 128, 64, 32
LANES = 128

# Packed-parameter row offsets (all multiples of 8 so every in-kernel slice
# is (8,128)-tile aligned).
R_PROBS = 0
R_W1 = 8
R_B1 = R_W1 + LANES             # 136
R_W2 = R_B1 + 8                 # 144
R_B2 = R_W2 + LANES             # 272
R_W3 = R_B2 + 8                 # 280
R_B3 = R_W3 + LANES             # 408
R_W4 = R_B3 + 8                 # 416
R_B4 = R_W4 + LANES             # 544
TOTAL_ROWS = ((R_B4 + 1 + 7) // 8) * 8   # 552


# --------------------------------------------------------------------------
# Glue: faithful (buggy-but-exact) dense gate construction + state evolution.
# --------------------------------------------------------------------------
def _bit(v, q):
    return (v >> q) & 1


def build_full_gates(theta):
    """Dense gate matrices exactly reproducing the PyTorch apply_gate /
    apply_cnot construction. apply_gate only copies gate[b, b] (the -i*sin
    RX terms are never read), so every matrix -- and the state -- is real."""
    idx = np.arange(DIM)
    theta_np = np.asarray(theta, dtype=np.float64)
    gates = []

    # 1) "Hadamard" on every qubit (dense version produced by apply_gate).
    h_diag = np.array([1.0, -1.0], dtype=np.float64) / math.sqrt(2.0)
    for q in range(N_SPECIES):
        br = _bit(idx[:, None], q)
        bc = _bit(idx[None, :], q)
        gates.append(np.where(br == bc, h_diag[br], 0.0))

    # 2) "RX(theta[i, j])" on qubit i: only cos(theta/2) survives apply_gate.
    for i in range(N_SPECIES):
        br = _bit(idx[:, None], i)
        bc = _bit(idx[None, :], i)
        mask = (br == bc).astype(np.float64)
        for j in range(N_STRATEGIES):
            gates.append(mask * math.cos(float(theta_np[i, j]) / 2.0))

    # 3) CNOT(control=i, target=j) for i < j (apply_cnot is the standard CNOT).
    for i in range(N_SPECIES):
        for j in range(i + 1, N_SPECIES):
            cm, tm = 1 << i, 1 << j
            g = np.eye(DIM)
            for r in range(DIM):
                if r & cm:
                    s = r ^ tm
                    g[r, r] = 0.0
                    g[s, s] = 0.0
                    g[r, s] = 1.0
                    g[s, r] = 1.0
            gates.append(g)

    return np.stack(gates, axis=0).astype(np.float32)      # (n_gates, D, D)


def compute_probs(theta):
    """|amplitude|^2 of the evolved |0...0> state.  Pure function of the
    theta parameter -> evaluated once at parameter-build time."""
    state = np.zeros((DIM,), dtype=np.float32)
    state[0] = 1.0
    for g in build_full_gates(theta):
        state = g @ state
    return (state * state)[None, :].astype(np.float32)     # (1, DIM)


def pack_params(probs, w1, b1, w2, b2, w3, b3, w4, b4, interactions):
    """One lane-dense (TOTAL_ROWS, 128) f32 buffer holding every kernel
    constant, with interactions/residual folded into the last layer."""
    fold = np.eye(N_SPECIES, dtype=np.float32) + np.asarray(interactions, np.float32)
    w4f = np.asarray(w4, np.float32) @ fold                 # (32, 4)
    b4f = np.asarray(b4, np.float32) @ fold                 # (1, 4)

    buf = np.zeros((TOTAL_ROWS, LANES), dtype=np.float32)
    buf[R_PROBS, :DIM] = np.asarray(probs, np.float32)[0]
    buf[R_W1:R_W1 + DIM, :H1] = np.asarray(w1, np.float32)
    buf[R_B1, :H1] = np.asarray(b1, np.float32)[0]
    buf[R_W2:R_W2 + H1, :H2] = np.asarray(w2, np.float32)
    buf[R_B2, :H2] = np.asarray(b2, np.float32)[0]
    buf[R_W3:R_W3 + H2, :H3] = np.asarray(w3, np.float32)
    buf[R_B3, :H3] = np.asarray(b3, np.float32)[0]
    buf[R_W4:R_W4 + H3, :N_SPECIES] = w4f
    buf[R_B4, :N_SPECIES] = b4f[0]
    return jnp.asarray(buf)


# --------------------------------------------------------------------------
# Pallas kernel: MLP (with folded interactions/residual) + noise add.
# Zero-padding makes every padded lane/row contribute exactly 0, so the
# (1,128)@(128,128) chain equals the original (1,16)->128->64->32->4 MLP.
# --------------------------------------------------------------------------
def quantum_eco_kernel(packed_ref, noise_ref, out_ref):
    f32 = jnp.float32
    probs = packed_ref[R_PROBS:R_PROBS + 1, :]              # (1, 128)
    w1 = packed_ref[R_W1:R_W1 + LANES, :]                   # (128, 128)
    b1 = packed_ref[R_B1:R_B1 + 1, :]
    w2 = packed_ref[R_W2:R_W2 + LANES, :]
    b2 = packed_ref[R_B2:R_B2 + 1, :]
    w3 = packed_ref[R_W3:R_W3 + LANES, :]
    b3 = packed_ref[R_B3:R_B3 + 1, :]
    w4 = packed_ref[R_W4:R_W4 + LANES, :]                   # already folded
    b4 = packed_ref[R_B4:R_B4 + 1, :]                       # already folded

    h = jnp.maximum(jnp.dot(probs, w1, preferred_element_type=f32) + b1, 0.0)
    h = jnp.maximum(jnp.dot(h, w2, preferred_element_type=f32) + b2, 0.0)
    h = jnp.maximum(jnp.dot(h, w3, preferred_element_type=f32) + b3, 0.0)
    rs = jnp.dot(h, w4, preferred_element_type=f32) + b4    # (1, 128), only [:4] real

    out_ref[...] = rs[:, :N_SPECIES] + noise_ref[...]


def quantum_ecological_forward(packed_params, noise):
    vmem = pl.BlockSpec(memory_space=pltpu.MemorySpace.VMEM)
    return pl.pallas_call(
        quantum_eco_kernel,
        out_shape=jax.ShapeDtypeStruct((1, N_SPECIES), jnp.float32),
        in_specs=[vmem, vmem],
        out_specs=vmem,
    )(packed_params, noise)


# --------------------------------------------------------------------------
# Pure-JAX reference (unfused: full gate chain + separate interactions).
# --------------------------------------------------------------------------
def reference_forward(raw, noise):
    gates = jnp.asarray(build_full_gates(np.asarray(raw["theta"])))
    state = jnp.zeros((DIM,), jnp.float32).at[0].set(1.0)
    for g in range(gates.shape[0]):
        state = gates[g] @ state
    probs = (state * state)[None, :]
    h = jax.nn.relu(probs @ raw["w1"] + raw["b1"])
    h = jax.nn.relu(h @ raw["w2"] + raw["b2"])
    h = jax.nn.relu(h @ raw["w3"] + raw["b3"])
    rs = h @ raw["w4"] + raw["b4"]
    return rs + rs @ raw["interactions"] + noise


# --------------------------------------------------------------------------
# Deterministic parameter init + driver.
# --------------------------------------------------------------------------
def init_params(key):
    keys = jax.random.split(key, 10)
    theta = jax.random.normal(keys[0], (N_SPECIES, N_STRATEGIES), jnp.float32)
    interactions = jax.random.normal(keys[1], (N_SPECIES, N_SPECIES), jnp.float32)

    def linear(kw, kb, fan_in, fan_out):
        bound = 1.0 / math.sqrt(fan_in)
        w = jax.random.uniform(kw, (fan_in, fan_out), jnp.float32, -bound, bound)
        b = jax.random.uniform(kb, (1, fan_out), jnp.float32, -bound, bound)
        return w, b

    w1, b1 = linear(keys[2], keys[3], DIM, H1)
    w2, b2 = linear(keys[4], keys[5], H1, H2)
    w3, b3 = linear(keys[6], keys[7], H2, H3)
    w4, b4 = linear(keys[8], keys[9], H3, N_SPECIES)

    raw = dict(theta=theta, interactions=interactions,
               w1=w1, b1=b1, w2=w2, b2=b2, w3=w3, b3=b3, w4=w4, b4=b4)

    probs = compute_probs(np.asarray(theta))                 # quantum part hoisted
    packed = pack_params(probs, w1, b1, w2, b2, w3, b3, w4, b4, interactions)
    return raw, packed


if __name__ == "__main__":
    root = jax.random.PRNGKey(0)
    k_params, k_x, k_noise = jax.random.split(root, 3)

    raw, packed = init_params(k_params)

    # x is accepted by the PyTorch forward but never used; kept for parity.
    x = jax.random.normal(k_x, (1, DIM), jnp.float32)
    del x

    # torch.randn_like(...) * 0.05 -> deterministic noise generated in glue.
    noise = 0.05 * jax.random.normal(k_noise, (1, N_SPECIES), jnp.float32)

    out = jax.block_until_ready(quantum_ecological_forward(packed, noise))
    ref = jax.block_until_ready(reference_forward(raw, noise))

    assert out.shape == (1, N_SPECIES) and out.dtype == jnp.float32
    np.testing.assert_allclose(np.asarray(out), np.asarray(ref),
                               rtol=1e-3, atol=1e-3)
    print("KERNEL_OK")
</pallas_src>

<mosaic_0001>
module attributes {stable_mosaic.version = 11 : i64} {
  func.func @quantum_eco_kernel(%arg0: memref<552x128xf32, #tpu.memory_space<vmem>>, %arg1: memref<1x4xf32, #tpu.memory_space<vmem>>, %arg2: memref<1x4xf32, #tpu.memory_space<vmem>>) attributes {dimension_semantics = [], scalar_prefetch = 0 : i64, scratch_operands = 0 : i64, tpu.core_type = #tpu.core_type<tc>} {
    %c0 = arith.constant 0 : index
    %c0_0 = arith.constant 0 : index
    %0 = vector.load %arg0[%c0, %c0_0] : memref<552x128xf32, #tpu.memory_space<vmem>>, vector<1x128xf32>
    %c8 = arith.constant 8 : index
    %c0_1 = arith.constant 0 : index
    %1 = vector.load %arg0[%c8, %c0_1] : memref<552x128xf32, #tpu.memory_space<vmem>>, vector<128x128xf32>
    %c136 = arith.constant 136 : index
    %c0_2 = arith.constant 0 : index
    %2 = vector.load %arg0[%c136, %c0_2] : memref<552x128xf32, #tpu.memory_space<vmem>>, vector<1x128xf32>
    %c144 = arith.constant 144 : index
    %c0_3 = arith.constant 0 : index
    %3 = vector.load %arg0[%c144, %c0_3] : memref<552x128xf32, #tpu.memory_space<vmem>>, vector<128x128xf32>
    %c272 = arith.constant 272 : index
    %c0_4 = arith.constant 0 : index
    %4 = vector.load %arg0[%c272, %c0_4] : memref<552x128xf32, #tpu.memory_space<vmem>>, vector<1x128xf32>
    %c280 = arith.constant 280 : index
    %c0_5 = arith.constant 0 : index
    %5 = vector.load %arg0[%c280, %c0_5] : memref<552x128xf32, #tpu.memory_space<vmem>>, vector<128x128xf32>
    %c408 = arith.constant 408 : index
    %c0_6 = arith.constant 0 : index
    %6 = vector.load %arg0[%c408, %c0_6] : memref<552x128xf32, #tpu.memory_space<vmem>>, vector<1x128xf32>
    %c416 = arith.constant 416 : index
    %c0_7 = arith.constant 0 : index
    %7 = vector.load %arg0[%c416, %c0_7] : memref<552x128xf32, #tpu.memory_space<vmem>>, vector<128x128xf32>
    %c544 = arith.constant 544 : index
    %c0_8 = arith.constant 0 : index
    %8 = vector.load %arg0[%c544, %c0_8] : memref<552x128xf32, #tpu.memory_space<vmem>>, vector<1x128xf32>
    %cst = arith.constant dense<0.000000e+00> : vector<1x128xf32>
    %9 = tpu.matmul %0, %1, %cst {dimension_numbers = #tpu.dot_dimension_numbers<[1], [0], [0], [1], [0, 0, 1, 1], [], []>} : vector<1x128xf32>, vector<128x128xf32>, vector<1x128xf32> -> vector<1x128xf32>
    %10 = arith.addf %9, %2 : vector<1x128xf32>
    %cst_9 = arith.constant 0.000000e+00 : f32
    %11 = vector.broadcast %cst_9 : f32 to vector<1x128xf32>
    %12 = arith.maximumf %10, %11 : vector<1x128xf32>
    %cst_10 = arith.constant dense<0.000000e+00> : vector<1x128xf32>
    %13 = tpu.matmul %12, %3, %cst_10 {dimension_numbers = #tpu.dot_dimension_numbers<[1], [0], [0], [1], [0, 0, 1, 1], [], []>} : vector<1x128xf32>, vector<128x128xf32>, vector<1x128xf32> -> vector<1x128xf32>
    %14 = arith.addf %13, %4 : vector<1x128xf32>
    %cst_11 = arith.constant 0.000000e+00 : f32
    %15 = vector.broadcast %cst_11 : f32 to vector<1x128xf32>
    %16 = arith.maximumf %14, %15 : vector<1x128xf32>
    %cst_12 = arith.constant dense<0.000000e+00> : vector<1x128xf32>
    %17 = tpu.matmul %16, %5, %cst_12 {dimension_numbers = #tpu.dot_dimension_numbers<[1], [0], [0], [1], [0, 0, 1, 1], [], []>} : vector<1x128xf32>, vector<128x128xf32>, vector<1x128xf32> -> vector<1x128xf32>
    %18 = arith.addf %17, %6 : vector<1x128xf32>
    %cst_13 = arith.constant 0.000000e+00 : f32
    %19 = vector.broadcast %cst_13 : f32 to vector<1x128xf32>
    %20 = arith.maximumf %18, %19 : vector<1x128xf32>
    %cst_14 = arith.constant dense<0.000000e+00> : vector<1x128xf32>
    %21 = tpu.matmul %20, %7, %cst_14 {dimension_numbers = #tpu.dot_dimension_numbers<[1], [0], [0], [1], [0, 0, 1, 1], [], []>} : vector<1x128xf32>, vector<128x128xf32>, vector<1x128xf32> -> vector<1x128xf32>
    %22 = arith.addf %21, %8 : vector<1x128xf32>
    %23 = vector.extract_strided_slice %22 {offsets = [0, 0], sizes = [1, 4], strides = [1, 1]} : vector<1x128xf32> to vector<1x4xf32>
    %c0_15 = arith.constant 0 : index
    %c0_16 = arith.constant 0 : index
    %24 = vector.load %arg1[%c0_15, %c0_16] : memref<1x4xf32, #tpu.memory_space<vmem>>, vector<1x4xf32>
    %25 = arith.addf %23, %24 : vector<1x4xf32>
    %c0_17 = arith.constant 0 : index
    %c0_18 = arith.constant 0 : index
    %26 = vector.load %arg2[%c0_17, %c0_18] : memref<1x4xf32, #tpu.memory_space<vmem>>, vector<1x4xf32>
    tpu.vector_store %arg2[%c0_17, %c0_18], %25 {strides = array<i32>} : memref<1x4xf32, #tpu.memory_space<vmem>>, vector<1x4xf32>,
    return
  }
}

</mosaic_0001>

<llo_original>
// kernel: tpu_custom_call.1
$region0: #{tpu_custom_call.1}
  #allocation0 [shape = 'u32[]', space=smem, size = 0x4, offset = 0x4, fixed_abs, tag = 'smem constant byte address 0x4 - core index']
  #allocation1 [shape = 'u32[144,128]{1,0:T(1,128)}', space=vmem, size = 0x12000, scoped, tag = 'internal scratch']
  %s0 = inlined_call_operand.hbm [shape: f32[552,128], index: 0, kind: input, shape index: {}]
  %s1 = inlined_call_operand.vmem [shape: f32[1,4], index: 1, kind: input, shape index: {}]
  %s2 = inlined_call_operand.hbm [shape: f32[1,4], index: 2, kind: output, shape index: {}]
  %s3 = sld [smem:[#allocation0]]
  $region22: #{tpu_custom_call.1} parent=0
    _
  %s5 = ssub.s32 1, %s3
  %s6 = scalar_select 0, %s5, %s3
  $region1: #{tpu_custom_call.1} parent=0
    #allocation2 [shape = 'u8[282624]{0}', space=vmem, size = 0x45000, scoped, tag = 'input window, operand 0, single buffered']
    #allocation3 [shape = 's32[1]{0}', space=sflag, size = 0x4, scoped, tag = 'scoped memory for tpu_custom_call.1']
    #allocation4 [shape = 's32[1]{0}', space=sflag, size = 0x4, scoped, tag = 'scoped memory for tpu_custom_call.1']
    #allocation5 [shape = 'u8[512]{0}', space=vmem, size = 0x400, scoped, tag = 'output window, operand 0, single buffered']
    %7 = vsyncpa [#allocation3], 0
    %8 = vsyncpa [#allocation4], 0
    // Predicated region
    $region2: #{tpu_custom_call.1} parent=1 // pred_check
      _
    $region3: #{tpu_custom_call.1} parent=1 // pred_check_branch
      %10 = sbr.rel (0) target = $region5
    $region4: #{tpu_custom_call.1} parent=1 // pred_region
      %s12 = ssub.s32 8832, 8832
      %13 = vsyncadd [#allocation3], %s12
      %s14 = sshll.u32 [#allocation2], 4
      %s15 = int_to_ptr.vmem [resolvable:$true] %s14
      %20 = dma.hbm_to_vmem [thread:$0]  %s0, 8832, %s15, [#allocation3], 128, 128, 8
    $region5: #{tpu_custom_call.1} parent=1 // pred_fallthru
      _
    // Predicated region
    $region6: #{tpu_custom_call.1} parent=1 // pred_check
      _
    $region7: #{tpu_custom_call.1} parent=1 // pred_check_branch
      %22 = sbr.rel (0) target = $region9
    $region8: #{tpu_custom_call.1} parent=1 // pred_region
      _
    $region9: #{tpu_custom_call.1} parent=1 // pred_fallthru
      _
    // Predicated region
    $region10: #{tpu_custom_call.1} parent=1 // pred_check
      _
    $region11: #{tpu_custom_call.1} parent=1 // pred_check_branch
      %24 = sbr.rel (0) target = $region13
    $region12: #{tpu_custom_call.1} parent=1 // pred_region
      %25 = dma.done [#allocation3], 8832
    $region13: #{tpu_custom_call.1} parent=1 // pred_fallthru
      _
    %v26 = vld [vmem:[#allocation2] sm:$0x1]
    %v27 = vld [vmem:[#allocation2 + $0x8] sm:$0xff]
    %v28 = vld [vmem:[#allocation2 + $0x10] sm:$0xff]
    %v29 = vld [vmem:[#allocation2 + $0x18] sm:$0xff]
    %v30 = vld [vmem:[#allocation2 + $0x20] sm:$0xff]
    %v31 = vld [vmem:[#allocation2 + $0x28] sm:$0xff]
    %v32 = vld [vmem:[#allocation2 + $0x30] sm:$0xff]
    %v33 = vld [vmem:[#allocation2 + $0x38] sm:$0xff]
    %v34 = vld [vmem:[#allocation2 + $0x40] sm:$0xff]
    %v35 = vld [vmem:[#allocation2 + $0x48] sm:$0xff]
    %v36 = vld [vmem:[#allocation2 + $0x50] sm:$0xff]
    %v37 = vld [vmem:[#allocation2 + $0x58] sm:$0xff]
    %v38 = vld [vmem:[#allocation2 + $0x60] sm:$0xff]
    %v39 = vld [vmem:[#allocation2 + $0x68] sm:$0xff]
    %v40 = vld [vmem:[#allocation2 + $0x70] sm:$0xff]
    %v41 = vld [vmem:[#allocation2 + $0x78] sm:$0xff]
    %v42 = vld [vmem:[#allocation2 + $0x80] sm:$0xff]
    %v43 = vld [vmem:[#allocation2 + $0x88] sm:$0x1]
    %v44 = vld [vmem:[#allocation2 + $0x90] sm:$0xff]
    %v45 = vld [vmem:[#allocation2 + $0x98] sm:$0xff]
    %v46 = vld [vmem:[#allocation2 + $0xa0] sm:$0xff]
    %v47 = vld [vmem:[#allocation2 + $0xa8] sm:$0xff]
    %v48 = vld [vmem:[#allocation2 + $0xb0] sm:$0xff]
    %v49 = vld [vmem:[#allocation2 + $0xb8] sm:$0xff]
    %v50 = vld [vmem:[#allocation2 + $0xc0] sm:$0xff]
    %v51 = vld [vmem:[#allocation2 + $0xc8] sm:$0xff]
    %v52 = vld [vmem:[#allocation2 + $0xd0] sm:$0xff]
    %v53 = vld [vmem:[#allocation2 + $0xd8] sm:$0xff]
    %v54 = vld [vmem:[#allocation2 + $0xe0] sm:$0xff]
    %v55 = vld [vmem:[#allocation2 + $0xe8] sm:$0xff]
    %v56 = vld [vmem:[#allocation2 + $0xf0] sm:$0xff]
    %v57 = vld [vmem:[#allocation2 + $0xf8] sm:$0xff]
    %v58 = vld [vmem:[#allocation2 + $0x100] sm:$0xff]
    %v59 = vld [vmem:[#allocation2 + $0x108] sm:$0xff]
    %v60 = vld [vmem:[#allocation2 + $0x110] sm:$0x1]
    %v61 = vld [vmem:[#allocation2 + $0x118] sm:$0xff]
    %v62 = vld [vmem:[#allocation2 + $0x120] sm:$0xff]
    %v63 = vld [vmem:[#allocation2 + $0x128] sm:$0xff]
    %v64 = vld [vmem:[#allocation2 + $0x130] sm:$0xff]
    %v65 = vld [vmem:[#allocation2 + $0x138] sm:$0xff]
    %v66 = vld [vmem:[#allocation2 + $0x140] sm:$0xff]
    %v67 = vld [vmem:[#allocation2 + $0x148] sm:$0xff]
    %v68 = vld [vmem:[#allocation2 + $0x150] sm:$0xff]
    %v69 = vld [vmem:[#allocation2 + $0x158] sm:$0xff]
    %v70 = vld [vmem:[#allocation2 + $0x160] sm:$0xff]
    %v71 = vld [vmem:[#allocation2 + $0x168] sm:$0xff]
    %v72 = vld [vmem:[#allocation2 + $0x170] sm:$0xff]
    %v73 = vld [vmem:[#allocation2 + $0x178] sm:$0xff]
    %v74 = vld [vmem:[#allocation2 + $0x180] sm:$0xff]
    %v75 = vld [vmem:[#allocation2 + $0x188] sm:$0xff]
    %v76 = vld [vmem:[#allocation2 + $0x190] sm:$0xff]
    %v77 = vld [vmem:[#allocation2 + $0x198] sm:$0x1]
    %v78 = vld [vmem:[#allocation2 + $0x1a0] sm:$0xff]
    %v79 = vld [vmem:[#allocation2 + $0x1a8] sm:$0xff]
    %v80 = vld [vmem:[#allocation2 + $0x1b0] sm:$0xff]
    %v81 = vld [vmem:[#allocation2 + $0x1b8] sm:$0xff]
    %v82 = vld [vmem:[#allocation2 + $0x1c0] sm:$0xff]
    %v83 = vld [vmem:[#allocation2 + $0x1c8] sm:$0xff]
    %v84 = vld [vmem:[#allocation2 + $0x1d0] sm:$0xff]
    %v85 = vld [vmem:[#allocation2 + $0x1d8] sm:$0xff]
    %v86 = vld [vmem:[#allocation2 + $0x1e0] sm:$0xff]
    %v87 = vld [vmem:[#allocation2 + $0x1e8] sm:$0xff]
    %v88 = vld [vmem:[#allocation2 + $0x1f0] sm:$0xff]
    %v89 = vld [vmem:[#allocation2 + $0x1f8] sm:$0xff]
    %v90 = vld [vmem:[#allocation2 + $0x200] sm:$0xff]
    %v91 = vld [vmem:[#allocation2 + $0x208] sm:$0xff]
    %v92 = vld [vmem:[#allocation2 + $0x210] sm:$0xff]
    %v93 = vld [vmem:[#allocation2 + $0x218] sm:$0xff]
    %v94 = vld [vmem:[#allocation2 + $0x220] sm:$0x1]
    %95 = vmatprep.subr.mxu0 0.0
    %96 = vmatpush1.msra.mxu0 %v27
    %97 = vmatprep.subr.mxu0 0.0
    %98 = vmatpush1.msra.mxu0 %v28
    %99 = vmatprep.subr.mxu0 0.0
    %100 = vmatpush1.msra.mxu0 %v29
    %101 = vmatprep.subr.mxu0 0.0
    %102 = vmatpush1.msra.mxu0 %v30
    %103 = vmatprep.subr.mxu0 0.0
    %104 = vmatpush1.msra.mxu0 %v31
    %105 = vmatprep.subr.mxu0 0.0
    %106 = vmatpush1.msra.mxu0 %v32
    %107 = vmatprep.subr.mxu0 0.0
    %108 = vmatpush1.msra.mxu0 %v33
    %109 = vmatprep.subr.mxu0 0.0
    %110 = vmatpush1.msra.mxu0 %v34
    %111 = vmatprep.subr.mxu0 0.0
    %112 = vmatpush1.msra.mxu0 %v35
    %113 = vmatprep.subr.mxu0 0.0
    %114 = vmatpush1.msra.mxu0 %v36
    %115 = vmatprep.subr.mxu0 0.0
    %116 = vmatpush1.msra.mxu0 %v37
    %117 = vmatprep.subr.mxu0 0.0
    %118 = vmatpush1.msra.mxu0 %v38
    %119 = vmatprep.subr.mxu0 0.0
    %120 = vmatpush1.msra.mxu0 %v39
    %121 = vmatprep.subr.mxu0 0.0
    %122 = vmatpush1.msra.mxu0 %v40
    %123 = vmatprep.subr.mxu0 0.0
    %124 = vmatpush1.msra.mxu0 %v41
    %125 = vmatprep.subr.mxu0 0.0
    %126 = vmatpush1.msra.mxu0 %v42
    %127 = vmatprep.subr.mxu0 0.0
    %128 = vmatpush1.msra.mxu0 0.0
    %129 = vmatprep.subr.mxu0 0.0
    %130 = vmatpush1.msra.mxu0 0.0
    %131 = vmatprep.subr.mxu0 0.0
    %132 = vmatpush1.msra.mxu0 0.0
    %133 = vmatprep.subr.mxu0 0.0
    %134 = vmatpush1.msra.mxu0 0.0
    %135 = vmatprep.subr.mxu0 0.0
    %136 = vmatpush1.msra.mxu0 0.0
    %137 = vmatprep.subr.mxu0 0.0
    %138 = vmatpush1.msra.mxu0 0.0
    %139 = vmatprep.subr.mxu0 0.0
    %140 = vmatpush1.msra.mxu0 0.0
    %141 = vmatprep.subr.mxu0 0.0
    %142 = vmatpush1.msra.mxu0 0.0
    %143 = vmatprep.subr.mxu0 0.0
    %144 = vmatpush1.msra.mxu0 0.0
    %145 = vmatprep.subr.mxu0 0.0
    %146 = vmatpush1.msra.mxu0 0.0
    %147 = vmatprep.subr.mxu0 0.0
    %148 = vmatpush1.msra.mxu0 0.0
    %149 = vmatprep.subr.mxu0 0.0
    %150 = vmatpush1.msra.mxu0 0.0
    %151 = vmatprep.subr.mxu0 0.0
    %152 = vmatpush1.msra.mxu0 0.0
    %153 = vmatprep.subr.mxu0 0.0
    %154 = vmatpush1.msra.mxu0 0.0
    %155 = vmatprep.subr.mxu0 0.0
    %156 = vmatpush1.msra.mxu0 0.0
    %157 = vmatprep.subr.mxu0 0.0
    %158 = vmatpush1.msra.mxu0 0.0
    %159 = vmatprep.mubr.f32.mxu0 0.0
    %160 = vmatmul.mubr.f32.gmra.mrb[0].mxu0 %v26
    %v161 = vpop.f32.mrb[0].mxu0
    %v162 = vadd.f32 %v43, %v161
    %v163 = vpop.f32.mrb[0].mxu0
    %164 = vdwg.mxu0
    %v165 = vmax.f32 %v162, 0.0
    %166 = vmatprep.subr.mxu0 0.0
    %167 = vmatpush1.msra.mxu0 %v44
    %168 = vmatprep.subr.mxu0 0.0
    %169 = vmatpush1.msra.mxu0 %v45
    %170 = vmatprep.subr.mxu0 0.0
    %171 = vmatpush1.msra.mxu0 %v46
    %172 = vmatprep.subr.mxu0 0.0
    %173 = vmatpush1.msra.mxu0 %v47
    %174 = vmatprep.subr.mxu0 0.0
    %175 = vmatpush1.msra.mxu0 %v48
    %176 = vmatprep.subr.mxu0 0.0
    %177 = vmatpush1.msra.mxu0 %v49
    %178 = vmatprep.subr.mxu0 0.0
    %179 = vmatpush1.msra.mxu0 %v50
    %180 = vmatprep.subr.mxu0 0.0
    %181 = vmatpush1.msra.mxu0 %v51
    %182 = vmatprep.subr.mxu0 0.0
    %183 = vmatpush1.msra.mxu0 %v52
    %184 = vmatprep.subr.mxu0 0.0
    %185 = vmatpush1.msra.mxu0 %v53
    %186 = vmatprep.subr.mxu0 0.0
    %187 = vmatpush1.msra.mxu0 %v54
    %188 = vmatprep.subr.mxu0 0.0
    %189 = vmatpush1.msra.mxu0 %v55
    %190 = vmatprep.subr.mxu0 0.0
    %191 = vmatpush1.msra.mxu0 %v56
    %192 = vmatprep.subr.mxu0 0.0
    %193 = vmatpush1.msra.mxu0 %v57
    %194 = vmatprep.subr.mxu0 0.0
    %195 = vmatpush1.msra.mxu0 %v58
    %196 = vmatprep.subr.mxu0 0.0
    %197 = vmatpush1.msra.mxu0 %v59
    %198 = vmatprep.subr.mxu0 0.0
    %199 = vmatpush1.msra.mxu0 0.0
    %200 = vmatprep.subr.mxu0 0.0
    %201 = vmatpush1.msra.mxu0 0.0
    %202 = vmatprep.subr.mxu0 0.0
    %203 = vmatpush1.msra.mxu0 0.0
    %204 = vmatprep.subr.mxu0 0.0
    %205 = vmatpush1.msra.mxu0 0.0
    %206 = vmatprep.subr.mxu0 0.0
    %207 = vmatpush1.msra.mxu0 0.0
    %208 = vmatprep.subr.mxu0 0.0
    %209 = vmatpush1.msra.mxu0 0.0
    %210 = vmatprep.subr.mxu0 0.0
    %211 = vmatpush1.msra.mxu0 0.0
    %212 = vmatprep.subr.mxu0 0.0
    %213 = vmatpush1.msra.mxu0 0.0
    %214 = vmatprep.subr.mxu0 0.0
    %215 = vmatpush1.msra.mxu0 0.0
    %216 = vmatprep.subr.mxu0 0.0
    %217 = vmatpush1.msra.mxu0 0.0
    %218 = vmatprep.subr.mxu0 0.0
    %219 = vmatpush1.msra.mxu0 0.0
    %220 = vmatprep.subr.mxu0 0.0
    %221 = vmatpush1.msra.mxu0 0.0
    %222 = vmatprep.subr.mxu0 0.0
    %223 = vmatpush1.msra.mxu0 0.0
    %224 = vmatprep.subr.mxu0 0.0
    %225 = vmatpush1.msra.mxu0 0.0
    %226 = vmatprep.subr.mxu0 0.0
    %227 = vmatpush1.msra.mxu0 0.0
    %228 = vmatprep.subr.mxu0 0.0
    %229 = vmatpush1.msra.mxu0 0.0
    %230 = vmatprep.mubr.f32.mxu0 0.0
    %231 = vmatmul.mubr.f32.gmra.mrb[0].mxu0 %v165
    %v232 = vpop.f32.mrb[0].mxu0
    %v233 = vadd.f32 %v60, %v232
    %v234 = vpop.f32.mrb[0].mxu0
    %235 = vdwg.mxu0
    %v236 = vmax.f32 %v233, 0.0
    %237 = vmatprep.subr.mxu0 0.0
    %238 = vmatpush1.msra.mxu0 %v61
    %239 = vmatprep.subr.mxu0 0.0
    %240 = vmatpush1.msra.mxu0 %v62
    %241 = vmatprep.subr.mxu0 0.0
    %242 = vmatpush1.msra.mxu0 %v63
    %243 = vmatprep.subr.mxu0 0.0
    %244 = vmatpush1.msra.mxu0 %v64
    %245 = vmatprep.subr.mxu0 0.0
    %246 = vmatpush1.msra.mxu0 %v65
    %247 = vmatprep.subr.mxu0 0.0
    %248 = vmatpush1.msra.mxu0 %v66
    %249 = vmatprep.subr.mxu0 0.0
    %250 = vmatpush1.msra.mxu0 %v67
    %251 = vmatprep.subr.mxu0 0.0
    %252 = vmatpush1.msra.mxu0 %v68
    %253 = vmatprep.subr.mxu0 0.0
    %254 = vmatpush1.msra.mxu0 %v69
    %255 = vmatprep.subr.mxu0 0.0
    %256 = vmatpush1.msra.mxu0 %v70
    %257 = vmatprep.subr.mxu0 0.0
    %258 = vmatpush1.msra.mxu0 %v71
    %259 = vmatprep.subr.mxu0 0.0
    %260 = vmatpush1.msra.mxu0 %v72
    %261 = vmatprep.subr.mxu0 0.0
    %262 = vmatpush1.msra.mxu0 %v73
    %263 = vmatprep.subr.mxu0 0.0
    %264 = vmatpush1.msra.mxu0 %v74
    %265 = vmatprep.subr.mxu0 0.0
    %266 = vmatpush1.msra.mxu0 %v75
    %267 = vmatprep.subr.mxu0 0.0
    %268 = vmatpush1.msra.mxu0 %v76
    %269 = vmatprep.subr.mxu0 0.0
    %270 = vmatpush1.msra.mxu0 0.0
    %271 = vmatprep.subr.mxu0 0.0
    %272 = vmatpush1.msra.mxu0 0.0
    %273 = vmatprep.subr.mxu0 0.0
    %274 = vmatpush1.msra.mxu0 0.0
    %275 = vmatprep.subr.mxu0 0.0
    %276 = vmatpush1.msra.mxu0 0.0
    %277 = vmatprep.subr.mxu0 0.0
    %278 = vmatpush1.msra.mxu0 0.0
    %279 = vmatprep.subr.mxu0 0.0
    %280 = vmatpush1.msra.mxu0 0.0
    %281 = vmatprep.subr.mxu0 0.0
    %282 = vmatpush1.msra.mxu0 0.0
    %283 = vmatprep.subr.mxu0 0.0
    %284 = vmatpush1.msra.mxu0 0.0
    %285 = vmatprep.subr.mxu0 0.0
    %286 = vmatpush1.msra.mxu0 0.0
    %287 = vmatprep.subr.mxu0 0.0
    %288 = vmatpush1.msra.mxu0 0.0
    %289 = vmatprep.subr.mxu0 0.0
    %290 = vmatpush1.msra.mxu0 0.0
    %291 = vmatprep.subr.mxu0 0.0
    %292 = vmatpush1.msra.mxu0 0.0
    %293 = vmatprep.subr.mxu0 0.0
    %294 = vmatpush1.msra.mxu0 0.0
    %295 = vmatprep.subr.mxu0 0.0
    %296 = vmatpush1.msra.mxu0 0.0
    %297 = vmatprep.subr.mxu0 0.0
    %298 = vmatpush1.msra.mxu0 0.0
    %299 = vmatprep.subr.mxu0 0.0
    %300 = vmatpush1.msra.mxu0 0.0
    %301 = vmatprep.mubr.f32.mxu0 0.0
    %302 = vmatmul.mubr.f32.gmra.mrb[0].mxu0 %v236
    %v303 = vpop.f32.mrb[0].mxu0
    %v304 = vadd.f32 %v77, %v303
    %v305 = vpop.f32.mrb[0].mxu0
    %306 = vdwg.mxu0
    %v307 = vmax.f32 %v304, 0.0
    %308 = vmatprep.subr.mxu0 0.0
    %309 = vmatpush1.msra.mxu0 %v78
    %310 = vmatprep.subr.mxu0 0.0
    %311 = vmatpush1.msra.mxu0 %v79
    %312 = vmatprep.subr.mxu0 0.0
    %313 = vmatpush1.msra.mxu0 %v80
    %314 = vmatprep.subr.mxu0 0.0
    %315 = vmatpush1.msra.mxu0 %v81
    %316 = vmatprep.subr.mxu0 0.0
    %317 = vmatpush1.msra.mxu0 %v82
    %318 = vmatprep.subr.mxu0 0.0
    %319 = vmatpush1.msra.mxu0 %v83
    %320 = vmatprep.subr.mxu0 0.0
    %321 = vmatpush1.msra.mxu0 %v84
    %322 = vmatprep.subr.mxu0 0.0
    %323 = vmatpush1.msra.mxu0 %v85
    %324 = vmatprep.subr.mxu0 0.0
    %325 = vmatpush1.msra.mxu0 %v86
    %326 = vmatprep.subr.mxu0 0.0
    %327 = vmatpush1.msra.mxu0 %v87
    %328 = vmatprep.subr.mxu0 0.0
    %329 = vmatpush1.msra.mxu0 %v88
    %330 = vmatprep.subr.mxu0 0.0
    %331 = vmatpush1.msra.mxu0 %v89
    %332 = vmatprep.subr.mxu0 0.0
    %333 = vmatpush1.msra.mxu0 %v90
    %334 = vmatprep.subr.mxu0 0.0
    %335 = vmatpush1.msra.mxu0 %v91
    %336 = vmatprep.subr.mxu0 0.0
    %337 = vmatpush1.msra.mxu0 %v92
    %338 = vmatprep.subr.mxu0 0.0
    %339 = vmatpush1.msra.mxu0 %v93
    %340 = vmatprep.subr.mxu0 0.0
    %341 = vmatpush1.msra.mxu0 0.0
    %342 = vmatprep.subr.mxu0 0.0
    %343 = vmatpush1.msra.mxu0 0.0
    %344 = vmatprep.subr.mxu0 0.0
    %345 = vmatpush1.msra.mxu0 0.0
    %346 = vmatprep.subr.mxu0 0.0
    %347 = vmatpush1.msra.mxu0 0.0
    %348 = vmatprep.subr.mxu0 0.0
    %349 = vmatpush1.msra.mxu0 0.0
    %350 = vmatprep.subr.mxu0 0.0
    %351 = vmatpush1.msra.mxu0 0.0
    %352 = vmatprep.subr.mxu0 0.0
    %353 = vmatpush1.msra.mxu0 0.0
    %354 = vmatprep.subr.mxu0 0.0
    %355 = vmatpush1.msra.mxu0 0.0
    %356 = vmatprep.subr.mxu0 0.0
    %357 = vmatpush1.msra.mxu0 0.0
    %358 = vmatprep.subr.mxu0 0.0
    %359 = vmatpush1.msra.mxu0 0.0
    %360 = vmatprep.subr.mxu0 0.0
    %361 = vmatpush1.msra.mxu0 0.0
    %362 = vmatprep.subr.mxu0 0.0
    %363 = vmatpush1.msra.mxu0 0.0
    %364 = vmatprep.subr.mxu0 0.0
    %365 = vmatpush1.msra.mxu0 0.0
    %366 = vmatprep.subr.mxu0 0.0
    %367 = vmatpush1.msra.mxu0 0.0
    %368 = vmatprep.subr.mxu0 0.0
    %369 = vmatpush1.msra.mxu0 0.0
    %370 = vmatprep.subr.mxu0 0.0
    %371 = vmatpush1.msra.mxu0 0.0
    %372 = vmatprep.mubr.f32.mxu0 0.0
    %373 = vmatmul.mubr.f32.gmra.mrb[0].mxu0 %v307
    %v374 = vpop.f32.mrb[0].mxu0
    %v375 = vadd.f32 %v94, %v374
    %v376 = vpop.f32.mrb[0].mxu0
    %377 = vdwg.mxu0
    %v378 = vld [vmem:[%s1] sm:$0x1]
    %v379 = vadd.f32 %v375, %v378
    %vm380 = vcmask 24576
    %381 = vst.msk [vmem:[#allocation5] sm:$0x1] %vm380, %v379
    // Predicated region
    $region14: #{tpu_custom_call.1} parent=1 // pred_check
      _
    $region15: #{tpu_custom_call.1} parent=1 // pred_check_branch
      %383 = sbr.rel (0) target = $region17
    $region16: #{tpu_custom_call.1} parent=1 // pred_region
      %s385 = ssub.s32 16, 16
      %386 = vsyncadd [#allocation4], %s385
      %s388 = sshll.u32 [#allocation5], 4
      %s389 = int_to_ptr.vmem [resolvable:$true] %s388
      %391 = dma.vmem_to_hbm [thread:$0]  %s389, 16, %s2, [#allocation4]
    $region17: #{tpu_custom_call.1} parent=1 // pred_fallthru
      _
    // Predicated region
    $region18: #{tpu_custom_call.1} parent=1 // pred_check
      _
    $region19: #{tpu_custom_call.1} parent=1 // pred_check_branch
      %393 = sbr.rel (0) target = $region21
    $region20: #{tpu_custom_call.1} parent=1 // pred_region
      %394 = dma.done [#allocation4], 16
    $region21: #{tpu_custom_call.1} parent=1 // pred_fallthru
      _
    %395 = vsyncpa [#allocation3], 1
    %396 = vsyncpa [#allocation4], 1

</llo_original>
